<compile_context>
chip_gen: v7x
topology: tpu7x:2x2x1
jax: 0.10.0
libtpu: 0.0.40
codegen_flags: <defaults>
</compile_context>

<pallas_src>
import functools

import jax
import jax.numpy as jnp
from jax import lax
from jax.experimental import pallas as pl
from jax.experimental.pallas import tpu as pltpu

D = 128             # config.n_embd
NUM_HEADS = 3       # velocity, duration, dt
DH = NUM_HEADS * D  # 384


def _note_heads_kernel(x_ref, w1_ref, b1_ref, w2_ref, b2_ref, out_ref):
    # x_ref  : (tm, D)   f32 (or bf16) activation tile
    # w1_ref : (D, 3D)   bf16  fused first-layer weights [W1_vel | W1_dur | W1_dt]
    # b1_ref : (1, 3D)   f32   fused first-layer biases
    # w2_ref : (3, D)    f32   per-head second-layer weight rows
    # b2_ref : (1, 3)    f32   second-layer biases
    # out_ref: (tm, 3)   f32   columns = (velocity, duration, dt)
    #
    # Cast to bf16 in-register (not in the wrapper -> no extra HBM pass).
    xb = x_ref[...].astype(jnp.bfloat16)

    # Fused first layer for all 3 heads on the MXU, f32 accumulation.
    h = jnp.dot(xb, w1_ref[...], preferred_element_type=jnp.float32)   # (tm, 3D)
    h = jnp.tanh(h + b1_ref[...])                                      # f32

    # Second layer (D -> 1 per head) on VPU + XLU instead of the MXU:
    # per head: elementwise multiply the head's 128-lane slice of h by its weight
    # row, then a cross-lane sum -> (tm, 1).
    w2 = w2_ref[...]                                                   # (3, D) f32
    cols = []
    for hd in range(NUM_HEADS):
        hh = h[:, hd * D:(hd + 1) * D]                                 # (tm, D) static lane-group slice
        cols.append(jnp.sum(hh * w2[hd:hd + 1, :], axis=-1, keepdims=True))  # (tm, 1)
    y = jnp.concatenate(cols, axis=-1) + b2_ref[...]                   # (tm, 3) f32

    # Softplus (threshold=20, matching torch.nn.Softplus defaults) on the duration
    # column only; columns 0 (velocity) and 2 (dt) pass through.
    # NOTE: rows past M in a partial last block are uninitialized; any NaN/Inf they
    # produce lands only in output rows that are masked on writeback (correct, but
    # may trip NaN-checking debug modes).
    sp = jnp.where(y > 20.0, y, jnp.log1p(jnp.exp(jnp.minimum(y, 20.0))))
    col = lax.broadcasted_iota(jnp.int32, y.shape, 1)
    out_ref[...] = jnp.where(col == 1, sp, y)


def _round_up(a, b):
    return ((a + b - 1) // b) * b


@functools.partial(jax.jit, static_argnames=("tm",))
def note_readout_heads(hidden_states, w1, b1, w2, b2, *, tm=2048):
    """hidden_states: (B, S, D).  Returns (velocity, duration, dt), each (B, S) f32."""
    B, S, Din = hidden_states.shape
    assert Din == D
    M = B * S

    # No dtype cast here: the kernel reads whatever dtype the upstream stack hands us
    # (f32 or bf16) and converts in-register.  Reshape is metadata-only.
    x = hidden_states.reshape(M, D)

    # Fuse the three heads' first layers into one (D, 3D) bf16 weight matrix; the
    # second layers stay as three f32 weight rows (no block-diagonal padding).
    w1_cat = jnp.concatenate([w1[0], w1[1], w1[2]], axis=1).astype(jnp.bfloat16)  # (D, 3D)
    b1_cat = b1.reshape(1, DH).astype(jnp.float32)                                # (1, 3D)
    w2_rows = w2.reshape(NUM_HEADS, D).astype(jnp.float32)                        # (3, D)
    b2_row = b2.reshape(1, NUM_HEADS).astype(jnp.float32)                         # (1, 3)

    # Row tiling:
    #  * default tm=2048: amortizes per-grid-step overhead, fits v5e's 16 MiB default
    #    scoped VMEM (working set ~8-10 MiB) and v7x's 64 MiB physical VMEM.
    #    TODO(synk): per-generation tm defaults (up to 4096 on v6e/v7x) need an
    #    explicit vmem_limit_bytes re-derivation.
    #  * cap tm_eff so the grid has >= 2 steps for moderate M -> both v7x TCs get work.
    #  * no padding of x; a non-divisible M just gives a partial last block.
    cand = min(tm, _round_up(pl.cdiv(M, 2), 256))
    tm_eff = min(cand, M)
    grid = (pl.cdiv(M, tm_eff),)

    out = pl.pallas_call(
        _note_heads_kernel,
        out_shape=jax.ShapeDtypeStruct((M, NUM_HEADS), jnp.float32),
        grid_spec=pltpu.PrefetchScalarGridSpec(
            num_scalar_prefetch=0,
            grid=grid,
            in_specs=[
                pl.BlockSpec((tm_eff, D), lambda i: (i, 0)),        # x tile
                pl.BlockSpec((D, DH), lambda i: (0, 0)),            # fused W1 (resident)
                pl.BlockSpec((1, DH), lambda i: (0, 0)),            # fused b1
                pl.BlockSpec((NUM_HEADS, D), lambda i: (0, 0)),     # W2 rows
                pl.BlockSpec((1, NUM_HEADS), lambda i: (0, 0)),     # b2
            ],
            out_specs=pl.BlockSpec((tm_eff, NUM_HEADS), lambda i: (i, 0)),
        ),
        compiler_params=pltpu.CompilerParams(
            dimension_semantics=("parallel",),        # shards row tiles across TCs (v7x)
            vmem_limit_bytes=32 * 1024 * 1024,        # explicit headroom for tm=2048
        ),
    )(x, w1_cat, b1_cat, w2_rows, b2_row)

    # Tiny (M,3) column split / reshape: ~12 B/row vs 512 B/row kernel input.
    velocity = out[:, 0].reshape(B, S)
    duration = out[:, 1].reshape(B, S)
    dt = out[:, 2].reshape(B, S)
    return velocity, duration, dt


def init_params(key):
    """Deterministic init, PyTorch-Linear-like uniform(-1/sqrt(fan_in), 1/sqrt(fan_in))."""
    ks = jax.random.split(key, 4)
    bound = 1.0 / jnp.sqrt(jnp.float32(D))
    w1 = jax.random.uniform(ks[0], (NUM_HEADS, D, D), jnp.float32, -bound, bound)
    b1 = jax.random.uniform(ks[1], (NUM_HEADS, 1, D), jnp.float32, -bound, bound)
    w2 = jax.random.uniform(ks[2], (NUM_HEADS, 1, D), jnp.float32, -bound, bound)
    b2 = jax.random.uniform(ks[3], (NUM_HEADS, 1, 1), jnp.float32, -bound, bound)
    return w1, b1, w2, b2


def _reference(hidden_states, w1, b1, w2, b2):
    """Pure-JAX f32 reference mirroring the PyTorch module."""
    x = hidden_states.astype(jnp.float32)
    outs = []
    for h in range(NUM_HEADS):
        hid = jnp.tanh(
            jnp.einsum("bsd,de->bse", x, w1[h], precision="highest") + b1[h, 0])
        y = jnp.einsum("bse,e->bs", hid, w2[h, 0], precision="highest") + b2[h, 0, 0]
        if h == 1:
            y = jax.nn.softplus(y)
        outs.append(y)
    return tuple(outs)


if __name__ == "__main__":
    key = jax.random.PRNGKey(0)
    k_x, k_p = jax.random.split(key)

    B, S = 2, 8  # small demo shapes; n_embd = 128 from the GPT2Config
    hidden_states = jax.random.normal(k_x, (B, S, D), jnp.float32)
    w1, b1, w2, b2 = init_params(k_p)

    vel, dur, dt = note_readout_heads(hidden_states, w1, b1, w2, b2)
    jax.block_until_ready((vel, dur, dt))

    vel_r, dur_r, dt_r = _reference(hidden_states, w1, b1, w2, b2)
    assert vel.shape == (B, S) and dur.shape == (B, S) and dt.shape == (B, S)
    # Tolerance loosened vs the pure-f32 reference because the first-layer matmul
    # runs in bf16 (with f32 accumulation); the second layer is now full f32.
    assert jnp.allclose(vel, vel_r, atol=3e-2, rtol=3e-2)
    assert jnp.allclose(dur, dur_r, atol=3e-2, rtol=3e-2)
    assert jnp.allclose(dt, dt_r, atol=3e-2, rtol=3e-2)

    print("KERNEL_OK")
</pallas_src>

<mosaic_0001>
module attributes {stable_mosaic.version = 11 : i64} {
  func.func @_note_heads_kernel(%arg0: i32, %arg1: memref<16x128xf32, #tpu.memory_space<vmem>>, %arg2: memref<128x384xbf16, #tpu.memory_space<vmem>>, %arg3: memref<1x384xf32, #tpu.memory_space<vmem>>, %arg4: memref<3x128xf32, #tpu.memory_space<vmem>>, %arg5: memref<1x3xf32, #tpu.memory_space<vmem>>, %arg6: memref<16x3xf32, #tpu.memory_space<vmem>>) attributes {dimension_semantics = [#tpu.dimension_semantics<parallel>], iteration_bounds = array<i64: 1>, scalar_prefetch = 0 : i64, scratch_operands = 0 : i64, tpu.core_type = #tpu.core_type<tc>, window_params = [{transform_indices = @transform_0, window_bounds = array<i64: 16, 128>}, {pipeline_mode = #tpu.pipeline_mode<synchronous>, transform_indices = @transform_1, window_bounds = array<i64: 128, 384>}, {pipeline_mode = #tpu.pipeline_mode<synchronous>, transform_indices = @transform_2, window_bounds = array<i64: 1, 384>}, {pipeline_mode = #tpu.pipeline_mode<synchronous>, transform_indices = @transform_3, window_bounds = array<i64: 3, 128>}, {pipeline_mode = #tpu.pipeline_mode<synchronous>, transform_indices = @transform_4, window_bounds = array<i64: 1, 3>}, {transform_indices = @transform_5, window_bounds = array<i64: 16, 3>}]} {
    %c0 = arith.constant 0 : index
    %c0_0 = arith.constant 0 : index
    %0 = vector.load %arg1[%c0, %c0_0] : memref<16x128xf32, #tpu.memory_space<vmem>>, vector<16x128xf32>
    %1 = arith.truncf %0 : vector<16x128xf32> to vector<16x128xbf16>
    %c0_1 = arith.constant 0 : index
    %c0_2 = arith.constant 0 : index
    %2 = vector.load %arg2[%c0_1, %c0_2] : memref<128x384xbf16, #tpu.memory_space<vmem>>, vector<128x384xbf16>
    %cst = arith.constant dense<0.000000e+00> : vector<16x384xf32>
    %3 = tpu.matmul %1, %2, %cst {dimension_numbers = #tpu.dot_dimension_numbers<[1], [0], [0], [1], [0, 0, 1, 1], [], []>} : vector<16x128xbf16>, vector<128x384xbf16>, vector<16x384xf32> -> vector<16x384xf32>
    %c0_3 = arith.constant 0 : index
    %c0_4 = arith.constant 0 : index
    %4 = vector.load %arg3[%c0_3, %c0_4] : memref<1x384xf32, #tpu.memory_space<vmem>>, vector<1x384xf32>
    %5 = vector.broadcast %4 : vector<1x384xf32> to vector<16x384xf32>
    %6 = arith.addf %3, %5 : vector<16x384xf32>
    %7 = math.tanh %6 : vector<16x384xf32>
    %c0_5 = arith.constant 0 : index
    %c0_6 = arith.constant 0 : index
    %8 = vector.load %arg4[%c0_5, %c0_6] : memref<3x128xf32, #tpu.memory_space<vmem>>, vector<3x128xf32>
    %9 = vector.extract_strided_slice %7 {offsets = [0, 0], sizes = [16, 128], strides = [1, 1]} : vector<16x384xf32> to vector<16x128xf32>
    %10 = vector.extract_strided_slice %8 {offsets = [0, 0], sizes = [1, 128], strides = [1, 1]} : vector<3x128xf32> to vector<1x128xf32>
    %11 = vector.broadcast %10 : vector<1x128xf32> to vector<16x128xf32>
    %12 = arith.mulf %9, %11 : vector<16x128xf32>
    %cst_7 = arith.constant dense<0.000000e+00> : vector<16xf32>
    %13 = vector.multi_reduction <add>, %12, %cst_7 [1] : vector<16x128xf32> to vector<16xf32>
    %14 = vector.shape_cast %13 : vector<16xf32> to vector<16x1xf32>
    %15 = vector.extract_strided_slice %7 {offsets = [0, 128], sizes = [16, 128], strides = [1, 1]} : vector<16x384xf32> to vector<16x128xf32>
    %16 = vector.extract_strided_slice %8 {offsets = [1, 0], sizes = [1, 128], strides = [1, 1]} : vector<3x128xf32> to vector<1x128xf32>
    %17 = vector.broadcast %16 : vector<1x128xf32> to vector<16x128xf32>
    %18 = arith.mulf %15, %17 : vector<16x128xf32>
    %cst_8 = arith.constant dense<0.000000e+00> : vector<16xf32>
    %19 = vector.multi_reduction <add>, %18, %cst_8 [1] : vector<16x128xf32> to vector<16xf32>
    %20 = vector.shape_cast %19 : vector<16xf32> to vector<16x1xf32>
    %21 = vector.extract_strided_slice %7 {offsets = [0, 256], sizes = [16, 128], strides = [1, 1]} : vector<16x384xf32> to vector<16x128xf32>
    %22 = vector.extract_strided_slice %8 {offsets = [2, 0], sizes = [1, 128], strides = [1, 1]} : vector<3x128xf32> to vector<1x128xf32>
    %23 = vector.broadcast %22 : vector<1x128xf32> to vector<16x128xf32>
    %24 = arith.mulf %21, %23 : vector<16x128xf32>
    %cst_9 = arith.constant dense<0.000000e+00> : vector<16xf32>
    %25 = vector.multi_reduction <add>, %24, %cst_9 [1] : vector<16x128xf32> to vector<16xf32>
    %26 = vector.shape_cast %25 : vector<16xf32> to vector<16x1xf32>
    %27 = tpu.concatenate %14, %20, %26 in 1 : vector<16x1xf32>, vector<16x1xf32>, vector<16x1xf32> -> vector<16x3xf32>
    %c0_10 = arith.constant 0 : index
    %c0_11 = arith.constant 0 : index
    %28 = vector.load %arg5[%c0_10, %c0_11] : memref<1x3xf32, #tpu.memory_space<vmem>>, vector<1x3xf32>
    %29 = vector.broadcast %28 : vector<1x3xf32> to vector<16x3xf32>
    %30 = arith.addf %27, %29 : vector<16x3xf32>
    %cst_12 = arith.constant 2.000000e+01 : f32
    %31 = vector.broadcast %cst_12 : f32 to vector<16x3xf32>
    %32 = arith.cmpf ogt, %30, %31 : vector<16x3xf32>
    %cst_13 = arith.constant 2.000000e+01 : f32
    %33 = vector.broadcast %cst_13 : f32 to vector<16x3xf32>
    %34 = arith.minimumf %30, %33 : vector<16x3xf32>
    %35 = math.exp %34 : vector<16x3xf32>
    %36 = math.log1p %35 : vector<16x3xf32>
    %37 = arith.select %32, %30, %36 : vector<16x3xi1>, vector<16x3xf32>
    %38 = tpu.iota {dimensions = array<i32: 1>} : vector<16x3xi32>
    %c1_i32 = arith.constant 1 : i32
    %39 = vector.broadcast %c1_i32 : i32 to vector<16x3xi32>
    %40 = arith.cmpi eq, %38, %39 : vector<16x3xi32>
    %41 = arith.select %40, %37, %30 : vector<16x3xi1>, vector<16x3xf32>
    %c0_14 = arith.constant 0 : index
    %c0_15 = arith.constant 0 : index
    %42 = vector.load %arg6[%c0_14, %c0_15] : memref<16x3xf32, #tpu.memory_space<vmem>>, vector<16x3xf32>
    tpu.vector_store %arg6[%c0_14, %c0_15], %41 {strides = array<i32>} : memref<16x3xf32, #tpu.memory_space<vmem>>, vector<16x3xf32>,
    return
  }
  func.func @transform_0(%arg0: i32) -> (i32, i32) {
    %c0_i32 = arith.constant 0 : i32
    %c0_i32_0 = arith.constant 0 : i32
    return %arg0, %c0_i32 : i32, i32
  }
  func.func @transform_1(%arg0: i32) -> (i32, i32) {
    %c0_i32 = arith.constant 0 : i32
    %c0_i32_0 = arith.constant 0 : i32
    %c0_i32_1 = arith.constant 0 : i32
    return %c0_i32, %c0_i32_0 : i32, i32
  }
  func.func @transform_2(%arg0: i32) -> (i32, i32) {
    %c0_i32 = arith.constant 0 : i32
    %c0_i32_0 = arith.constant 0 : i32
    %c0_i32_1 = arith.constant 0 : i32
    return %c0_i32, %c0_i32_0 : i32, i32
  }
  func.func @transform_3(%arg0: i32) -> (i32, i32) {
    %c0_i32 = arith.constant 0 : i32
    %c0_i32_0 = arith.constant 0 : i32
    %c0_i32_1 = arith.constant 0 : i32
    return %c0_i32, %c0_i32_0 : i32, i32
  }
  func.func @transform_4(%arg0: i32) -> (i32, i32) {
    %c0_i32 = arith.constant 0 : i32
    %c0_i32_0 = arith.constant 0 : i32
    %c0_i32_1 = arith.constant 0 : i32
    return %c0_i32, %c0_i32_0 : i32, i32
  }
  func.func @transform_5(%arg0: i32) -> (i32, i32) {
    %c0_i32 = arith.constant 0 : i32
    %c0_i32_0 = arith.constant 0 : i32
    return %arg0, %c0_i32 : i32, i32
  }
}

</mosaic_0001>

<llo_original>
// kernel: squeeze.10
$region0: #{squeeze.10}
  %s0 = inlined_call_operand.vmem [shape: f32[16], index: 0, kind: input, shape index: {}]
  %s1 = inlined_call_operand.hbm [shape: f32[2,8], index: 1, kind: output, shape index: {}]
  $region1: #{squeeze.10} parent=0
    #allocation0 [shape = 'u8[1024]{0}', space=vmem, size = 0x400, scoped, tag = 'operand span for operand 1']
    #allocation1 [shape = 's32[1]{0}', space=sflag, size = 0x4, scoped, tag = 'scoped memory for squeeze.10']
    #allocation2 [shape = 'u8[4096]{0}', space=vmem, size = 0x1000, scoped, tag = 'scoped mem for output reshape']
    #allocation3 [shape = 'u8[4096]{0}', space=vmem, size = 0x1000, scoped, tag = 'scoped mem for input reshape']
    %2 = vsyncpa [#allocation1], 0
    %s4 = sshllo.u32 0, 1
    %v5 = vld [vmem:[%s0] sm:%s4]
    %6 = vst [vmem:[#allocation3] sm:%s4] %v5
    %v7 = vld [vmem:[#allocation3] sm:$0x1]
    %vm8 = vcmask 64512
    %9 = vst.msk [vmem:[#allocation2] sm:$0x1] %vm8, %v7
    %v10 = vld [vmem:[#allocation3] sm:$0x1]
    %11 = vrot.lane.b32.xlu0 %v10, 120
    %v12 = vpop.permute.xlu0 %11
    %vm13 = vcmask 64512
    %s14 = scalar_lea.vmem [#allocation2], 1
    %15 = vst.msk [vmem:[%s14] sm:$0x1] %vm13, %v12
    %s17 = sshllo.u32 0, 2
    %v19 = vld [vmem:[#allocation2] sm:%s17]
    %s20 = sshllo.u32 0, 2
    %21 = vst [vmem:[#allocation0] sm:%s20] %v19
    %s23 = ssub.s32 32, 32
    %24 = vsyncadd [#allocation1], %s23
    %s26 = sshll.u32 [#allocation0], 4
    %s27 = int_to_ptr.vmem [resolvable:$true] %s26
    %29 = dma.vmem_to_hbm [thread:$0]  %s27, 32, %s1, [#allocation1]
    %30 = dma.done [#allocation1], 32
    %31 = vsyncpa [#allocation1], 1

// kernel: note_readout_heads.1
$region0: #{note_readout_heads.1}
  #allocation0 [shape = 'u32[]', space=smem, size = 0x4, offset = 0x4, fixed_abs, tag = 'smem constant byte address 0x4 - core index']
  #allocation1 [shape = 'u32[144,128]{1,0:T(1,128)}', space=vmem, size = 0x12000, scoped, tag = 'internal scratch']
  %s0 = inlined_call_operand.vmem [shape: f32[16,128], index: 0, kind: input, shape index: {}]
  %s1 = inlined_call_operand.vmem [shape: bf16[128,384], index: 1, kind: input, shape index: {}]
  %s2 = inlined_call_operand.vmem [shape: f32[1,384], index: 2, kind: input, shape index: {}]
  %s3 = inlined_call_operand.vmem [shape: f32[3,128], index: 3, kind: input, shape index: {}]
  %s4 = inlined_call_operand.vmem [shape: f32[1,3], index: 4, kind: input, shape index: {}]
  %s5 = inlined_call_operand.vmem [shape: f32[16,3], index: 5, kind: output, shape index: {}]
  %s6 = sld [smem:[#allocation0]]
  $region30: #{note_readout_heads.1} parent=0
    _
  %s8 = ssub.s32 1, %s6
  %s9 = scalar_select 0, %s8, %s6
  // Predicated region
  $region2: #{note_readout_heads.1} parent=0 // pred_check
    _
  $region3: #{note_readout_heads.1} parent=0 // pred_check_branch
    %11 = sbr.rel (0) target = $region5
  $region4: #{note_readout_heads.1} parent=0 // pred_region
    _
  $region5: #{note_readout_heads.1} parent=0 // pred_fallthru
    _
  // Predicated region
  $region6: #{note_readout_heads.1} parent=0 // pred_check
    _
  $region7: #{note_readout_heads.1} parent=0 // pred_check_branch
    %13 = sbr.rel (0) target = $region9
  $region8: #{note_readout_heads.1} parent=0 // pred_region
    _
  $region9: #{note_readout_heads.1} parent=0 // pred_fallthru
    _
  // Predicated region
  $region10: #{note_readout_heads.1} parent=0 // pred_check
    _
  $region11: #{note_readout_heads.1} parent=0 // pred_check_branch
    %15 = sbr.rel (0) target = $region13
  $region12: #{note_readout_heads.1} parent=0 // pred_region
    _
  $region13: #{note_readout_heads.1} parent=0 // pred_fallthru
    _
  // Predicated region
  $region14: #{note_readout_heads.1} parent=0 // pred_check
    _
  $region15: #{note_readout_heads.1} parent=0 // pred_check_branch
    %17 = sbr.rel (0) target = $region17
  $region16: #{note_readout_heads.1} parent=0 // pred_region
    _
  $region17: #{note_readout_heads.1} parent=0 // pred_fallthru
    _
  // Predicated region
  $region18: #{note_readout_heads.1} parent=0 // pred_check
    _
  $region19: #{note_readout_heads.1} parent=0 // pred_check_branch
    %19 = sbr.rel (0) target = $region21
  $region20: #{note_readout_heads.1} parent=0 // pred_region
    _
  $region21: #{note_readout_heads.1} parent=0 // pred_fallthru
    _
  %v21 = vld [vmem:[%s0] sm:$0xff]
  %v22 = vld [vmem:[%s0 + $0x8] sm:$0xff]
  %v23 = vpack.c.bf16 %v22, %v21
  %v24 = vld [vmem:[%s1] sm:$0xff]
  %v25 = vld [vmem:[%s1 + $0x8] sm:$0xf]
  %v26 = vld [vmem:[%s1 + $0xc] sm:$0xff]
  %v27 = vld [vmem:[%s1 + $0x14] sm:$0xf]
  %v28 = vld [vmem:[%s1 + $0x18] sm:$0xff]
  %v29 = vld [vmem:[%s1 + $0x20] sm:$0xf]
  %v30 = vld [vmem:[%s1 + $0x24] sm:$0xff]
  %v31 = vld [vmem:[%s1 + $0x2c] sm:$0xf]
  %v32 = vld [vmem:[%s1 + $0x30] sm:$0xff]
  %v33 = vld [vmem:[%s1 + $0x38] sm:$0xf]
  %v34 = vld [vmem:[%s1 + $0x3c] sm:$0xff]
  %v35 = vld [vmem:[%s1 + $0x44] sm:$0xf]
  %v36 = vld [vmem:[%s1 + $0x48] sm:$0xff]
  %v37 = vld [vmem:[%s1 + $0x50] sm:$0xf]
  %v38 = vld [vmem:[%s1 + $0x54] sm:$0xff]
  %v39 = vld [vmem:[%s1 + $0x5c] sm:$0xf]
  %v40 = vld [vmem:[%s1 + $0x60] sm:$0xff]
  %v41 = vld [vmem:[%s1 + $0x68] sm:$0xf]
  %v42 = vld [vmem:[%s1 + $0x6c] sm:$0xff]
  %v43 = vld [vmem:[%s1 + $0x74] sm:$0xf]
  %v44 = vld [vmem:[%s1 + $0x78] sm:$0xff]
  %v45 = vld [vmem:[%s1 + $0x80] sm:$0xf]
  %v46 = vld [vmem:[%s1 + $0x84] sm:$0xff]
  %v47 = vld [vmem:[%s1 + $0x8c] sm:$0xf]
  %v48 = vld [vmem:[%s1 + $0x90] sm:$0xff]
  %v49 = vld [vmem:[%s1 + $0x98] sm:$0xf]
  %v50 = vld [vmem:[%s1 + $0x9c] sm:$0xff]
  %v51 = vld [vmem:[%s1 + $0xa4] sm:$0xf]
  %v52 = vld [vmem:[%s1 + $0xa8] sm:$0xff]
  %v53 = vld [vmem:[%s1 + $0xb0] sm:$0xf]
  %v54 = vld [vmem:[%s1 + $0xb4] sm:$0xff]
  %v55 = vld [vmem:[%s1 + $0xbc] sm:$0xf]
  %v56 = vld [vmem:[%s2] sm:$0x7]
  %v58 = vlaneseq
  %v59 = vshrl.u32 %v58, 7
  %v60 = vsub.s32 0, %v59
  %v61 = vrot.slane %v56, %v60
  %v62 = vlaneseq
  %v63 = vshrl.u32 %v62, 7
  %v64 = vsub.s32 1, %v63
  %v65 = vrot.slane %v56, %v64
  %v66 = vlaneseq
  %v67 = vshrl.u32 %v66, 7
  %v68 = vsub.s32 2, %v67
  %v69 = vrot.slane %v56, %v68
  %v105 = vunpack.c.l.b16 %v24
  %v106 = vunpack.c.h.b16 %v24
  %v107 = vunpack.c.l.b16 %v25
  %v108 = vunpack.c.l.b16 %v26
  %v109 = vunpack.c.h.b16 %v26
  %v110 = vunpack.c.l.b16 %v27
  %v111 = vunpack.c.l.b16 %v28
  %v112 = vunpack.c.h.b16 %v28
  %v113 = vunpack.c.l.b16 %v29
  %v114 = vunpack.c.l.b16 %v30
  %v115 = vunpack.c.h.b16 %v30
  %v116 = vunpack.c.l.b16 %v31
  %v117 = vunpack.c.l.b16 %v32
  %v118 = vunpack.c.h.b16 %v32
  %v119 = vunpack.c.l.b16 %v33
  %v120 = vunpack.c.l.b16 %v34
  %v121 = vunpack.c.h.b16 %v34
  %v122 = vunpack.c.l.b16 %v35
  %v123 = vunpack.c.l.b16 %v36
  %v124 = vunpack.c.h.b16 %v36
  %v125 = vunpack.c.l.b16 %v37
  %v126 = vunpack.c.l.b16 %v38
  %v127 = vunpack.c.h.b16 %v38
  %v128 = vunpack.c.l.b16 %v39
  %v129 = vunpack.c.l.b16 %v40
  %v130 = vunpack.c.h.b16 %v40
  %v131 = vunpack.c.l.b16 %v41
  %v132 = vunpack.c.l.b16 %v42
  %v133 = vunpack.c.h.b16 %v42
  %v134 = vunpack.c.l.b16 %v43
  %v135 = vunpack.c.l.b16 %v44
  %v136 = vunpack.c.h.b16 %v44
  %v137 = vunpack.c.l.b16 %v45
  %v138 = vunpack.c.l.b16 %v46
  %v139 = vunpack.c.h.b16 %v46
  %v140 = vunpack.c.l.b16 %v47
  %v141 = vunpack.c.l.b16 %v48
  %v142 = vunpack.c.h.b16 %v48
  %v143 = vunpack.c.l.b16 %v49
  %v144 = vunpack.c.l.b16 %v50
  %v145 = vunpack.c.h.b16 %v50
  %v146 = vunpack.c.l.b16 %v51
  %v147 = vunpack.c.l.b16 %v52
  %v148 = vunpack.c.h.b16 %v52
  %v149 = vunpack.c.l.b16 %v53
  %v150 = vunpack.c.l.b16 %v54
  %v151 = vunpack.c.h.b16 %v54
  %v152 = vunpack.c.l.b16 %v55
  %v153 = vpack.c.b16 %v108, %v105
  %v154 = vpack.c.b16 %v109, %v106
  %v155 = vpack.c.b16 %v110, %v107
  %v156 = vpack.c.b16 %v114, %v111
  %v157 = vpack.c.b16 %v115, %v112
  %v158 = vpack.c.b16 %v116, %v113
  %v159 = vpack.c.b16 %v120, %v117
  %v160 = vpack.c.b16 %v121, %v118
  %v161 = vpack.c.b16 %v122, %v119
  %v162 = vpack.c.b16 %v126, %v123
  %v163 = vpack.c.b16 %v127, %v124
  %v164 = vpack.c.b16 %v128, %v125
  %v165 = vpack.c.b16 %v132, %v129
  %v166 = vpack.c.b16 %v133, %v130
  %v167 = vpack.c.b16 %v134, %v131
  %v168 = vpack.c.b16 %v138, %v135
  %v169 = vpack.c.b16 %v139, %v136
  %v170 = vpack.c.b16 %v140, %v137
  %v171 = vpack.c.b16 %v144, %v141
  %v172 = vpack.c.b16 %v145, %v142
  %v173 = vpack.c.b16 %v146, %v143
  %v174 = vpack.c.b16 %v150, %v147
  %v175 = vpack.c.b16 %v151, %v148
  %v176 = vpack.c.b16 %v152, %v149
  %201 = vmatprep.subr.bf16.mxu0 %v154
  %202 = vmatpush1.bf16.msra.mxu0 %v153
  %203 = vmatprep.subr.bf16.mxu0 %v157
  %204 = vmatpush1.bf16.msra.mxu0 %v156
  %205 = vmatprep.subr.bf16.mxu0 %v160
  %206 = vmatpush1.bf16.msra.mxu0 %v159
  %207 = vmatprep.subr.bf16.mxu0 %v163
  %208 = vmatpush1.bf16.msra.mxu0 %v162
  %209 = vmatprep.subr.bf16.mxu0 %v166
  %210 = vmatpush1.bf16.msra.mxu0 %v165
  %211 = vmatprep.subr.bf16.mxu0 %v169
  %212 = vmatpush1.bf16.msra.mxu0 %v168
  %213 = vmatprep.subr.bf16.mxu0 %v172
  %214 = vmatpush1.bf16.msra.mxu0 %v171
  %215 = vmatprep.subr.bf16.mxu0 %v175
  %216 = vmatpush1.bf16.msra.mxu0 %v174
  %217 = vmatprep.subr.bf16.mxu0 0
  %218 = vmatpush1.bf16.msra.mxu0 0
  %219 = vmatprep.subr.bf16.mxu0 0
  %220 = vmatpush1.bf16.msra.mxu0 0
  %221 = vmatprep.subr.bf16.mxu0 0
  %222 = vmatpush1.bf16.msra.mxu0 0
  %223 = vmatprep.subr.bf16.mxu0 0
  %224 = vmatpush1.bf16.msra.mxu0 0
  %225 = vmatprep.subr.bf16.mxu0 0
  %226 = vmatpush1.bf16.msra.mxu0 0
  %227 = vmatprep.subr.bf16.mxu0 0
  %228 = vmatpush1.bf16.msra.mxu0 0
  %229 = vmatprep.subr.bf16.mxu0 0
  %230 = vmatpush1.bf16.msra.mxu0 0
  %231 = vmatprep.subr.bf16.mxu0 0
  %232 = vmatpush1.bf16.msra.mxu0 0
  %233 = vmatprep.mubr.bf16.mxu0 0
  %234 = vmatmul.mubr.bf16.gmra.mrb[0].mxu0 %v23
  %v235 = vpop.f32.mrb[0].mxu0
  %v236 = vadd.f32 %v61, %v235
  %v237 = vpop.f32.mrb[0].mxu0
  %v238 = vadd.f32 %v65, %v237
  %v239 = vpop.f32.mrb[0].mxu0
  %v240 = vadd.f32 %v61, %v239
  %v241 = vpop.f32.mrb[0].mxu0
  %v242 = vadd.f32 %v65, %v241
  %243 = vdwg.mxu0
  %244 = vmatprep.subr.bf16.mxu0 0
  %245 = vmatpush1.bf16.msra.mxu0 %v155
  %246 = vmatprep.subr.bf16.mxu0 0
  %247 = vmatpush1.bf16.msra.mxu0 %v158
  %248 = vmatprep.subr.bf16.mxu0 0
  %249 = vmatpush1.bf16.msra.mxu0 %v161
  %250 = vmatprep.subr.bf16.mxu0 0
  %251 = vmatpush1.bf16.msra.mxu0 %v164
  %252 = vmatprep.subr.bf16.mxu0 0
  %253 = vmatpush1.bf16.msra.mxu0 %v167
  %254 = vmatprep.subr.bf16.mxu0 0
  %255 = vmatpush1.bf16.msra.mxu0 %v170
  %256 = vmatprep.subr.bf16.mxu0 0
  %257 = vmatpush1.bf16.msra.mxu0 %v173
  %258 = vmatprep.subr.bf16.mxu0 0
  %259 = vmatpush1.bf16.msra.mxu0 %v176
  %260 = vmatprep.subr.bf16.mxu0 0
  %261 = vmatpush1.bf16.msra.mxu0 0
  %262 = vmatprep.subr.bf16.mxu0 0
  %263 = vmatpush1.bf16.msra.mxu0 0
  %264 = vmatprep.subr.bf16.mxu0 0
  %265 = vmatpush1.bf16.msra.mxu0 0
  %266 = vmatprep.subr.bf16.mxu0 0
  %267 = vmatpush1.bf16.msra.mxu0 0
  %268 = vmatprep.subr.bf16.mxu0 0
  %269 = vmatpush1.bf16.msra.mxu0 0
  %270 = vmatprep.subr.bf16.mxu0 0
  %271 = vmatpush1.bf16.msra.mxu0 0
  %272 = vmatprep.subr.bf16.mxu0 0
  %273 = vmatpush1.bf16.msra.mxu0 0
  %274 = vmatprep.subr.bf16.mxu0 0
  %275 = vmatpush1.bf16.msra.mxu0 0
  %276 = vmatprep.mubr.bf16.mxu0 0
  %277 = vmatmul.mubr.bf16.gmra.mrb[0].mxu0 %v23
  %v278 = vpop.f32.mrb[0].mxu0
  %v279 = vadd.f32 %v69, %v278
  %v280 = vpop.f32.mrb[0].mxu0
  %v281 = vpop.f32.mrb[0].mxu0
  %v282 = vadd.f32 %v69, %v281
  %v283 = vpop.f32.mrb[0].mxu0
  %284 = vdwg.mxu0
  %v285 = vtanh.pop %v236
  %v286 = vtanh.pop %v238
  %v287 = vtanh.pop %v279
  %v288 = vtanh.pop %v240
  %v289 = vtanh.pop %v242
  %v290 = vtanh.pop %v282
  %v291 = vld [vmem:[%s3] sm:$0x7]
  %v292 = vlaneseq
  %v293 = vshrl.u32 %v292, 7
  %v294 = vsub.s32 0, %v293
  %v295 = vrot.slane %v291, %v294
  %v296 = vmul.f32 %v285, %v295
  %v297 = vmul.f32 %v288, %v295
  %298 = vadd.xlane.f32.xlu0 %v296
  %v299 = vpop.xlane.xlu0 %298
  %300 = vadd.xlane.f32.xlu0 %v297
  %v301 = vpop.xlane.xlu0 %300
  %v302 = vlaneseq
  %v303 = vshrl.u32 %v302, 7
  %v304 = vsub.s32 1, %v303
  %v305 = vrot.slane %v291, %v304
  %v306 = vmul.f32 %v286, %v305
  %v307 = vmul.f32 %v289, %v305
  %308 = vadd.xlane.f32.xlu0 %v306
  %v309 = vpop.xlane.xlu0 %308
  %310 = vadd.xlane.f32.xlu0 %v307
  %v311 = vpop.xlane.xlu0 %310
  %v312 = vlaneseq
  %v313 = vshrl.u32 %v312, 7
  %v314 = vsub.s32 2, %v313
  %v315 = vrot.slane %v291, %v314
  %v316 = vmul.f32 %v287, %v315
  %v317 = vmul.f32 %v290, %v315
  %318 = vadd.xlane.f32.xlu0 %v316
  %v319 = vpop.xlane.xlu0 %318
  %320 = vadd.xlane.f32.xlu0 %v317
  %v321 = vpop.xlane.xlu0 %320
  %vm322 = vcmask 7168
  %v323 = vsel %vm322, %v299, %v309
  %v324 = vsel %vm322, %v301, %v311
  %vm325 = vcmask 15360
  %v326 = vsel %vm325, %v323, %v319
  %v327 = vsel %vm325, %v324, %v321
  %v328 = vld [vmem:[%s4] sm:$0x1]
  %v330 = vlaneseq
  %v331 = vshrl.u32 %v330, 7
  %v332 = vsub.s32 0, %v331
  %v333 = vrot.slane %v328, %v332
  %v335 = vadd.f32 %v326, %v333
  %v336 = vadd.f32 %v327, %v333
  %vm337 = vcmp.gt.f32.partialorder %v335, 20.0
  %vm338 = vcmp.gt.f32.partialorder %v336, 20.0
  %v339 = vmin.f32 %v335, 20.0
  %v340 = vmin.f32 %v336, 20.0
  %v341 = vmul.f32 %v339, 1.442695
  %v342 = vpow.pop %v341
  %v343 = vmul.f32 %v340, 1.442695
  %v344 = vpow.pop %v343
  %v345 = vadd.f32 %v342, 1.0
  %v346 = vlog2.pop %v345
  %v347 = vmul.f32 %v346, 0.6931472
  %v348 = vmul.f32 -0.5, %v342
  %v349 = vadd.f32 %v348, 1.0
  %v350 = vmul.f32 %v349, %v342
  %v351 = vand.u32 2147483647, %v342
  %vm352 = vcmp.lt.f32.partialorder %v351, 0.0004427343
  %v353 = vsel %vm352, %v350, %v347
  %v354 = vadd.f32 %v344, 1.0
  %v355 = vlog2.pop %v354
  %v356 = vmul.f32 %v355, 0.6931472
  %v357 = vmul.f32 -0.5, %v344
  %v358 = vadd.f32 %v357, 1.0
  %v359 = vmul.f32 %v358, %v344
  %v360 = vand.u32 2147483647, %v344
  %vm361 = vcmp.lt.f32.partialorder %v360, 0.0004427343
  %v362 = vsel %vm361, %v359, %v356
  %v363 = vsel %vm337, %v335, %v353
  %v364 = vsel %vm338, %v336, %v362
  %v365 = vlaneseq
  %v366 = vand.u32 %v365, 127
  %vm367 = vcmp.eq.s32.totalorder %v366, 1
  %v368 = vsel %vm367, %v363, %v335
  %v369 = vsel %vm367, %v364, %v336
  %vm370 = vcmask 23552
  %371 = vst.msk [vmem:[%s5] sm:$0xff] %vm370, %v368
  %372 = vst.msk [vmem:[%s5 + $0x8] sm:$0xff] %vm370, %v369
  // Predicated region
  $region22: #{note_readout_heads.1} parent=0 // pred_check
    _
  $region23: #{note_readout_heads.1} parent=0 // pred_check_branch
    %374 = sbr.rel (0) target = $region25
  $region24: #{note_readout_heads.1} parent=0 // pred_region
    _
  $region25: #{note_readout_heads.1} parent=0 // pred_fallthru
    _
  // Predicated region
  $region26: #{note_readout_heads.1} parent=0 // pred_check
    _
  $region27: #{note_readout_heads.1} parent=0 // pred_check_branch
    %376 = sbr.rel (0) target = $region29
  $region28: #{note_readout_heads.1} parent=0 // pred_region
    _
  $region29: #{note_readout_heads.1} parent=0 // pred_fallthru
    _

</llo_original>
